<compile_context>
chip_gen: v5e
topology: v5e:2x2
jax: 0.10.0
libtpu: 0.0.40
codegen_flags: <defaults>
</compile_context>

<pallas_src>
import functools
import math

import jax
import jax.numpy as jnp
from jax.experimental import pallas as pl
from jax.experimental.pallas import tpu as pltpu


def _round_up(x, m):
    return ((x + m - 1) // m) * m


# ---------------------------------------------------------------------------
# Kernels: plain tiled linear layer with a resident (K, O_pad) weight.
# ---------------------------------------------------------------------------
def _linear_bias_kernel(x_ref, w_ref, b_ref, o_ref, *, precision):
    # x_ref: (TB, K)   w_ref: (K, O_pad)   b_ref: (1, O_pad)   o_ref: (TB, O_pad)
    x = x_ref[...]
    if x.dtype != w_ref.dtype:          # only emit the cast when actually needed
        x = x.astype(w_ref.dtype)
    acc = jnp.dot(x, w_ref[...], preferred_element_type=jnp.float32,
                  precision=precision)
    o_ref[...] = (acc + b_ref[...].astype(jnp.float32)).astype(o_ref.dtype)


def _linear_nobias_kernel(x_ref, w_ref, o_ref, *, precision):
    x = x_ref[...]
    if x.dtype != w_ref.dtype:
        x = x.astype(w_ref.dtype)
    acc = jnp.dot(x, w_ref[...], preferred_element_type=jnp.float32,
                  precision=precision)
    o_ref[...] = acc.astype(o_ref.dtype)


# ---------------------------------------------------------------------------
# Helpers
# ---------------------------------------------------------------------------
def _physical_vmem_bytes():
    try:
        return int(pltpu.get_tpu_info().vmem_capacity_bytes)
    except Exception:
        return 64 << 20  # v7x size; safe lower bound for v5e/v6e as well


def _pick_batch_tile(B_pad, row_bytes_x, row_bytes_out, vmem_cap, resident_bytes):
    """Largest multiple-of-8 divisor of B_pad that fits VMEM and keeps the grid long."""
    per_row = 2 * row_bytes_x + 2 * row_bytes_out        # x + out, double-buffered
    avail = max(vmem_cap - resident_bytes - (2 << 20), 1 << 20)
    tb_cap_vmem = max(8, avail // max(per_row, 1))
    # Keep >= ~8 grid steps so the x DMA pipelines and v7x can split the
    # "parallel" axis across its 2 TensorCores (per-step overhead ~0.35 us).
    min_steps = 8
    tb_cap_steps = B_pad // min_steps if B_pad >= 8 * min_steps else B_pad
    target = int(min(tb_cap_vmem, tb_cap_steps, 1024, B_pad))
    target = max(8, (target // 8) * 8)
    best, d = 8, 8
    while d <= target:
        if B_pad % d == 0:
            best = d
        d += 8
    return best


# ---------------------------------------------------------------------------
# Wrapper
# ---------------------------------------------------------------------------
def factored_linear_2d(x, weight_spatial, weight_feature, bias=None,
                       weight_feature_constraint=None,
                       weight_spatial_constraint=None,
                       compute_dtype=jnp.float32,
                       batch_tile=None,
                       precision=None):
    """Pallas TPU implementation of FactoredLinear2D.forward.

    x              : (B, C, H, W)  NCHW (same as PyTorch); dtype is streamed as-is
    weight_spatial : (O, H, W)
    weight_feature : (O, C)
    bias           : (O,) or None
    returns        : (B, O) with x.dtype
    """
    B, C, H, W = x.shape
    O = weight_spatial.shape[0]
    P = H * W
    K = C * P

    # ---- one-time weight materialization, directly in (K, O) layout ----
    ws = weight_spatial.reshape(O, P).astype(jnp.float32)
    wf = weight_feature.astype(jnp.float32)
    if weight_spatial_constraint == 'abs':
        ws = jnp.abs(ws)
    if weight_feature_constraint == 'abs':
        wf = jnp.abs(wf)

    if C != 1:
        # w_t[c*P + p, o] = wf[o, c] * ws[o, p]
        w_t = jnp.einsum('oc,op->cpo', wf, ws).reshape(K, O)
    else:
        # in_channels == 1: PyTorch expand branch ignores weight_feature.
        w_t = ws.T  # (P, O) == (K, O)

    # Lane-dense output: pad O up to 128 (256 once O is large enough to
    # approach the compute-bound regime on v6e/v7x's 2x256^2 MXU).
    o_align = 256 if O >= 704 else 128
    O_pad = _round_up(O, o_align)
    if O_pad != O:
        w_t = jnp.pad(w_t, ((0, 0), (0, O_pad - O)))
    w_t = w_t.astype(compute_dtype)

    has_bias = bias is not None
    if has_bias:
        b2d = bias.reshape(1, O).astype(jnp.float32)
        if O_pad != O:
            b2d = jnp.pad(b2d, ((0, 0), (0, O_pad - O)))

    # ---- batch tiling: pad B only to a multiple of 8, TB divides B_pad ----
    x_flat = x.reshape(B, K)
    x_itemsize = x_flat.dtype.itemsize
    w_itemsize = jnp.dtype(compute_dtype).itemsize
    out_dtype = x_flat.dtype

    B_pad = _round_up(B, 8)
    if B_pad != B:
        x_flat = jnp.pad(x_flat, ((0, B_pad - B), (0, 0)))

    phys_vmem = _physical_vmem_bytes()
    vmem_cap = max(phys_vmem - (8 << 20), 16 << 20)      # headroom for compiler scratch
    # Conservative resident footprint (counted double even though we request
    # Buffered(1), so the fallback path also fits).
    resident_bytes = 2 * K * O_pad * w_itemsize + (2 * O_pad * 4 if has_bias else 0)

    if batch_tile is None:
        TB = _pick_batch_tile(B_pad,
                              row_bytes_x=K * x_itemsize,
                              row_bytes_out=O_pad * jnp.dtype(out_dtype).itemsize,
                              vmem_cap=vmem_cap,
                              resident_bytes=resident_bytes)
    else:
        TB = max(8, (int(batch_tile) // 8) * 8)
        if B_pad % TB != 0:                    # keep the no-ragged-block invariant
            B_new = _round_up(B_pad, TB)
            x_flat = jnp.pad(x_flat, ((0, B_new - B_pad), (0, 0)))
            B_pad = B_new

    grid = (B_pad // TB,)

    # ---- VMEM budget + cost estimate ----
    footprint = (2 * TB * K * x_itemsize                                  # x (dbl buf)
                 + resident_bytes                                         # weight (+bias)
                 + 2 * TB * O_pad * jnp.dtype(out_dtype).itemsize)        # out (dbl buf)
    vmem_limit_bytes = int(min(vmem_cap, max(footprint * 1.25 + (2 << 20), 16 << 20)))

    cost = pl.CostEstimate(
        flops=2 * B_pad * K * O_pad,
        bytes_accessed=(B_pad * K * x_itemsize
                        + K * O_pad * w_itemsize
                        + B_pad * O_pad * jnp.dtype(out_dtype).itemsize
                        + (O_pad * 4 if has_bias else 0)),
        transcendentals=0)

    if has_bias:
        kernel_fn = functools.partial(_linear_bias_kernel, precision=precision)
        operands = [x_flat, w_t, b2d]
    else:
        kernel_fn = functools.partial(_linear_nobias_kernel, precision=precision)
        operands = [x_flat, w_t]

    def _build_call(single_buffer_resident):
        resident_kwargs = (
            dict(pipeline_mode=pl.Buffered(1)) if single_buffer_resident else {})
        in_specs = [
            pl.BlockSpec((TB, K), lambda i: (i, 0)),                     # x: streamed
            pl.BlockSpec((K, O_pad), lambda i: (0, 0), **resident_kwargs),  # weight: resident
        ]
        if has_bias:
            in_specs.append(
                pl.BlockSpec((1, O_pad), lambda i: (0, 0), **resident_kwargs))
        return pl.pallas_call(
            kernel_fn,
            out_shape=jax.ShapeDtypeStruct((B_pad, O_pad), out_dtype),
            grid=grid,
            in_specs=in_specs,
            out_specs=pl.BlockSpec((TB, O_pad), lambda i: (i, 0)),
            compiler_params=pltpu.CompilerParams(
                dimension_semantics=("parallel",),        # batch tiles independent
                vmem_limit_bytes=vmem_limit_bytes),
            cost_estimate=cost,
        )

    try:
        out = _build_call(True)(*operands)
    except Exception:
        # Fallback if single-buffering via pipeline_mode is rejected by this
        # jax/Mosaic version; footprint/limits above already account for it.
        out = _build_call(False)(*operands)

    return out[:B, :O]


# ---------------------------------------------------------------------------
# Pure-JAX reference mirroring the PyTorch forward exactly.
# ---------------------------------------------------------------------------
def _reference(x, weight_spatial, weight_feature, bias,
               weight_feature_constraint=None, weight_spatial_constraint=None):
    B, C, H, W = x.shape
    O = weight_spatial.shape[0]
    ws = weight_spatial
    wf = weight_feature
    if weight_feature_constraint == 'abs':
        wf = jnp.abs(wf)
    if weight_spatial_constraint == 'abs':
        ws = jnp.abs(ws)
    ws_v = ws.reshape(O, 1, H, W)
    wf_v = wf.reshape(O, C, 1, 1)
    if C != 1:
        weight = ws_v * wf_v
    else:
        weight = jnp.broadcast_to(ws_v, (O, C, H, W))
    weight = weight.reshape(O, C * H * W)
    out = x.reshape(B, -1) @ weight.T
    if bias is not None:
        out = out + bias[None, :]
    return out


if __name__ == "__main__":
    # Shapes consistent with the module: batch=2, in_channels=4,
    # map_size=(16, 16), out_features=32.
    B, C, H, W, O = 2, 4, 16, 16, 32

    key = jax.random.PRNGKey(0)
    k_x, k_ws, k_wf, k_b, k_x2 = jax.random.split(key, 5)

    stdv = 1.0 / math.sqrt(C * H * W)
    x = jax.random.normal(k_x, (B, C, H, W), dtype=jnp.float32)
    weight_spatial = jax.random.uniform(
        k_ws, (O, H, W), dtype=jnp.float32, minval=-stdv, maxval=stdv)
    # Non-trivial weight_feature so the factored product is actually exercised.
    weight_feature = jax.random.uniform(
        k_wf, (O, C), dtype=jnp.float32, minval=0.5, maxval=1.5)
    bias = jax.random.uniform(
        k_b, (O,), dtype=jnp.float32, minval=-stdv, maxval=stdv)

    # --- Test A: f32, bias, no constraints ---
    out = jax.block_until_ready(
        factored_linear_2d(x, weight_spatial, weight_feature, bias))
    ref = _reference(x, weight_spatial, weight_feature, bias)
    assert out.shape == (B, O)
    assert jnp.allclose(out, ref, atol=1e-5, rtol=1e-5), "mismatch (f32, bias)"

    # --- Test B: f32, no bias, abs constraints ---
    out_b = jax.block_until_ready(
        factored_linear_2d(x, weight_spatial, weight_feature, None,
                           weight_feature_constraint='abs',
                           weight_spatial_constraint='abs'))
    ref_b = _reference(x, weight_spatial, weight_feature, None,
                       weight_feature_constraint='abs',
                       weight_spatial_constraint='abs')
    assert jnp.allclose(out_b, ref_b, atol=1e-5, rtol=1e-5), "mismatch (abs)"

    # --- Test C: in_channels == 1 branch (weight_feature ignored) ---
    x1 = jax.random.normal(k_x, (B, 1, H, W), dtype=jnp.float32)
    wf1 = jax.random.uniform(k_wf, (O, 1), dtype=jnp.float32,
                             minval=0.5, maxval=1.5)
    out_c = jax.block_until_ready(
        factored_linear_2d(x1, weight_spatial, wf1, bias))
    ref_c = _reference(x1, weight_spatial, wf1, bias)
    assert jnp.allclose(out_c, ref_c, atol=1e-5, rtol=1e-5), "mismatch (C==1)"

    # --- Test D: bf16 compute path (v6e/v7x lever), relaxed tolerance ---
    out_d = jax.block_until_ready(
        factored_linear_2d(x, weight_spatial, weight_feature, bias,
                           compute_dtype=jnp.bfloat16))
    assert jnp.allclose(out_d, ref, atol=3e-2, rtol=3e-2), "mismatch (bf16)"

    # --- Test E: larger batch exercising a multi-step grid (pipelined x stream,
    #     divisor-based TB with no padded-row waste) ---
    B2 = 72
    x2 = jax.random.normal(k_x2, (B2, C, H, W), dtype=jnp.float32)
    out_e = jax.block_until_ready(
        factored_linear_2d(x2, weight_spatial, weight_feature, bias))
    ref_e = _reference(x2, weight_spatial, weight_feature, bias)
    assert out_e.shape == (B2, O)
    assert jnp.allclose(out_e, ref_e, atol=1e-5, rtol=1e-5), "mismatch (multi-tile)"

    print("KERNEL_OK")
</pallas_src>

<mosaic_0001>
module attributes {stable_mosaic.version = 11 : i64} {
  func.func @_linear_bias_kernel(%arg0: i32, %arg1: memref<8x1024xf32, #tpu.memory_space<vmem>>, %arg2: memref<1024x128xf32, #tpu.memory_space<vmem>>, %arg3: memref<1x128xf32, #tpu.memory_space<vmem>>, %arg4: memref<8x128xf32, #tpu.memory_space<vmem>>) attributes {dimension_semantics = [#tpu.dimension_semantics<parallel>], iteration_bounds = array<i64: 1>, scalar_prefetch = 0 : i64, scratch_operands = 0 : i64, tpu.core_type = #tpu.core_type<tc>, window_params = [{transform_indices = @transform_0, window_bounds = array<i64: 8, 1024>}, {pipeline_mode = #tpu.pipeline_mode<synchronous>, transform_indices = @transform_1, window_bounds = array<i64: 1024, 128>}, {pipeline_mode = #tpu.pipeline_mode<synchronous>, transform_indices = @transform_2, window_bounds = array<i64: 1, 128>}, {transform_indices = @transform_3, window_bounds = array<i64: 8, 128>}]} {
    %c0 = arith.constant 0 : index
    %c0_0 = arith.constant 0 : index
    %0 = vector.load %arg1[%c0, %c0_0] : memref<8x1024xf32, #tpu.memory_space<vmem>>, vector<8x1024xf32>
    %c0_1 = arith.constant 0 : index
    %c0_2 = arith.constant 0 : index
    %1 = vector.load %arg2[%c0_1, %c0_2] : memref<1024x128xf32, #tpu.memory_space<vmem>>, vector<1024x128xf32>
    %cst = arith.constant dense<0.000000e+00> : vector<8x128xf32>
    %2 = tpu.matmul %0, %1, %cst {dimension_numbers = #tpu.dot_dimension_numbers<[1], [0], [0], [1], [0, 0, 1, 1], [], []>} : vector<8x1024xf32>, vector<1024x128xf32>, vector<8x128xf32> -> vector<8x128xf32>
    %c0_3 = arith.constant 0 : index
    %c0_4 = arith.constant 0 : index
    %3 = vector.load %arg3[%c0_3, %c0_4] : memref<1x128xf32, #tpu.memory_space<vmem>>, vector<1x128xf32>
    %4 = vector.broadcast %3 : vector<1x128xf32> to vector<8x128xf32>
    %5 = arith.addf %2, %4 : vector<8x128xf32>
    %c0_5 = arith.constant 0 : index
    %c0_6 = arith.constant 0 : index
    %6 = vector.load %arg4[%c0_5, %c0_6] : memref<8x128xf32, #tpu.memory_space<vmem>>, vector<8x128xf32>
    tpu.vector_store %arg4[%c0_5, %c0_6], %5 {strides = array<i32>} : memref<8x128xf32, #tpu.memory_space<vmem>>, vector<8x128xf32>,
    return
  }
  func.func @transform_0(%arg0: i32) -> (i32, i32) {
    %c0_i32 = arith.constant 0 : i32
    %c0_i32_0 = arith.constant 0 : i32
    return %arg0, %c0_i32 : i32, i32
  }
  func.func @transform_1(%arg0: i32) -> (i32, i32) {
    %c0_i32 = arith.constant 0 : i32
    %c0_i32_0 = arith.constant 0 : i32
    %c0_i32_1 = arith.constant 0 : i32
    return %c0_i32, %c0_i32_0 : i32, i32
  }
  func.func @transform_2(%arg0: i32) -> (i32, i32) {
    %c0_i32 = arith.constant 0 : i32
    %c0_i32_0 = arith.constant 0 : i32
    %c0_i32_1 = arith.constant 0 : i32
    return %c0_i32, %c0_i32_0 : i32, i32
  }
  func.func @transform_3(%arg0: i32) -> (i32, i32) {
    %c0_i32 = arith.constant 0 : i32
    %c0_i32_0 = arith.constant 0 : i32
    return %arg0, %c0_i32 : i32, i32
  }
}

module attributes {stable_mosaic.version = 11 : i64} {
  func.func @_linear_bias_kernel(%arg0: i32, %arg1: memref<8x1024xf32, #tpu.memory_space<vmem>>, %arg2: memref<1024x128xf32, #tpu.memory_space<vmem>>, %arg3: memref<1x128xf32, #tpu.memory_space<vmem>>, %arg4: memref<8x128xf32, #tpu.memory_space<vmem>>) attributes {dimension_semantics = [#tpu.dimension_semantics<parallel>], iteration_bounds = array<i64: 1>, scalar_prefetch = 0 : i64, scratch_operands = 0 : i64, tpu.core_type = #tpu.core_type<tc>, window_params = [{transform_indices = @transform_0, window_bounds = array<i64: 8, 1024>}, {pipeline_mode = #tpu.pipeline_mode<synchronous>, transform_indices = @transform_1, window_bounds = array<i64: 1024, 128>}, {pipeline_mode = #tpu.pipeline_mode<synchronous>, transform_indices = @transform_2, window_bounds = array<i64: 1, 128>}, {transform_indices = @transform_3, window_bounds = array<i64: 8, 128>}]} {
    %c0 = arith.constant 0 : index
    %c0_0 = arith.constant 0 : index
    %0 = vector.load %arg1[%c0, %c0_0] : memref<8x1024xf32, #tpu.memory_space<vmem>>, vector<8x1024xf32>
    %c0_1 = arith.constant 0 : index
    %c0_2 = arith.constant 0 : index
    %1 = vector.load %arg2[%c0_1, %c0_2] : memref<1024x128xf32, #tpu.memory_space<vmem>>, vector<1024x128xf32>
    %cst = arith.constant dense<0.000000e+00> : vector<8x128xf32>
    %2 = tpu.matmul %0, %1, %cst {dimension_numbers = #tpu.dot_dimension_numbers<[1], [0], [0], [1], [0, 0, 1, 1], [], []>} : vector<8x1024xf32>, vector<1024x128xf32>, vector<8x128xf32> -> vector<8x128xf32>
    %c0_3 = arith.constant 0 : index
    %c0_4 = arith.constant 0 : index
    %3 = vector.load %arg3[%c0_3, %c0_4] : memref<1x128xf32, #tpu.memory_space<vmem>>, vector<1x128xf32>
    %4 = vector.broadcast %3 : vector<1x128xf32> to vector<8x128xf32>
    %5 = arith.addf %2, %4 : vector<8x128xf32>
    %c0_5 = arith.constant 0 : index
    %c0_6 = arith.constant 0 : index
    %6 = vector.load %arg4[%c0_5, %c0_6] : memref<8x128xf32, #tpu.memory_space<vmem>>, vector<8x128xf32>
    tpu.vector_store %arg4[%c0_5, %c0_6], %5 {strides = array<i32>} : memref<8x128xf32, #tpu.memory_space<vmem>>, vector<8x128xf32>,
    return
  }
  func.func @transform_0(%arg0: i32) -> (i32, i32) {
    %c0_i32 = arith.constant 0 : i32
    %c0_i32_0 = arith.constant 0 : i32
    return %arg0, %c0_i32 : i32, i32
  }
  func.func @transform_1(%arg0: i32) -> (i32, i32) {
    %c0_i32 = arith.constant 0 : i32
    %c0_i32_0 = arith.constant 0 : i32
    %c0_i32_1 = arith.constant 0 : i32
    return %c0_i32, %c0_i32_0 : i32, i32
  }
  func.func @transform_2(%arg0: i32) -> (i32, i32) {
    %c0_i32 = arith.constant 0 : i32
    %c0_i32_0 = arith.constant 0 : i32
    %c0_i32_1 = arith.constant 0 : i32
    return %c0_i32, %c0_i32_0 : i32, i32
  }
  func.func @transform_3(%arg0: i32) -> (i32, i32) {
    %c0_i32 = arith.constant 0 : i32
    %c0_i32_0 = arith.constant 0 : i32
    return %arg0, %c0_i32 : i32, i32
  }
}

</mosaic_0001>

<llo_original>
// kernel: tpu_custom_call.1
$region0: #{tpu_custom_call.1}
  #allocation0 [shape = 'u32[]', space=smem, size = 0x4, offset = 0x4, fixed_abs, tag = 'smem constant byte address 0x4 - core index']
  #allocation1 [shape = 'u32[72,128]{1,0:T(1,128)}', space=vmem, size = 0x9000, scoped, tag = 'internal scratch']
  %s0 = inlined_call_operand.hbm [shape: f32[8,1024], index: 0, kind: input, shape index: {}]
  %s1 = inlined_call_operand.hbm [shape: f32[1024,128], index: 1, kind: input, shape index: {}]
  %s2 = inlined_call_operand.vmem [shape: f32[1,128], index: 2, kind: input, shape index: {}]
  %s3 = inlined_call_operand.hbm [shape: f32[8,128], index: 3, kind: output, shape index: {}]
  %s4 = sld [smem:[#allocation0]]
  $region30: #{tpu_custom_call.1} parent=0
    _
  %s6 = ssub.s32 1, %s4
  %s7 = scalar_select 0, %s6, %s4
  $region1: #{tpu_custom_call.1} parent=0
    #allocation2 [shape = 'u8[32768]{0}', space=vmem, size = 0x8000, scoped, tag = 'input window, operand 0, single buffered']
    #allocation3 [shape = 's32[1]{0}', space=sflag, size = 0x4, scoped, tag = 'scoped memory for tpu_custom_call.1']
    #allocation4 [shape = 's32[1]{0}', space=sflag, size = 0x4, scoped, tag = 'scoped memory for tpu_custom_call.1']
    #allocation5 [shape = 'u8[524288]{0}', space=vmem, size = 0x80000, scoped, tag = 'input window, operand 1, single buffered']
    #allocation6 [shape = 's32[1]{0}', space=sflag, size = 0x4, scoped, tag = 'scoped memory for tpu_custom_call.1']
    #allocation7 [shape = 'u8[4096]{0}', space=vmem, size = 0x1000, scoped, tag = 'output window, operand 0, single buffered']
    %8 = vsyncpa [#allocation3], 0
    %9 = vsyncpa [#allocation6], 0
    %10 = vsyncpa [#allocation4], 0
    // Predicated region
    $region2: #{tpu_custom_call.1} parent=1 // pred_check
      _
    $region3: #{tpu_custom_call.1} parent=1 // pred_check_branch
      %12 = sbr.rel (0) target = $region5
    $region4: #{tpu_custom_call.1} parent=1 // pred_region
      %14 = vsyncadd [#allocation3], 0
      %s16 = sshll.u32 %s0, 4
      %s17 = int_to_ptr.hbm [resolvable:$true] %s16
      %s18 = sshll.u32 [#allocation2], 4
      %s19 = int_to_ptr.vmem [resolvable:$true] %s18
      %21 = dma.hbm_to_vmem [thread:$0]  %s17, 1024, %s19, [#allocation3]
    $region5: #{tpu_custom_call.1} parent=1 // pred_fallthru
      _
    // Predicated region
    $region6: #{tpu_custom_call.1} parent=1 // pred_check
      _
    $region7: #{tpu_custom_call.1} parent=1 // pred_check_branch
      %23 = sbr.rel (0) target = $region9
    $region8: #{tpu_custom_call.1} parent=1 // pred_region
      %25 = vsyncadd [#allocation6], 0
      %s26 = sshll.u32 %s1, 4
      %s27 = int_to_ptr.hbm [resolvable:$true] %s26
      %s28 = sshll.u32 [#allocation5], 4
      %s29 = int_to_ptr.vmem [resolvable:$true] %s28
      %34 = dma.hbm_to_vmem [thread:$0]  %s27, 16384, %s29, [#allocation6], 128, 128, 8
    $region9: #{tpu_custom_call.1} parent=1 // pred_fallthru
      _
    // Predicated region
    $region10: #{tpu_custom_call.1} parent=1 // pred_check
      _
    $region11: #{tpu_custom_call.1} parent=1 // pred_check_branch
      %36 = sbr.rel (0) target = $region13
    $region12: #{tpu_custom_call.1} parent=1 // pred_region
      _
    $region13: #{tpu_custom_call.1} parent=1 // pred_fallthru
      _
    // Predicated region
    $region14: #{tpu_custom_call.1} parent=1 // pred_check
      _
    $region15: #{tpu_custom_call.1} parent=1 // pred_check_branch
      %38 = sbr.rel (0) target = $region17
    $region16: #{tpu_custom_call.1} parent=1 // pred_region
      %40 = dma.done [#allocation3], 1024
    $region17: #{tpu_custom_call.1} parent=1 // pred_fallthru
      _
    // Predicated region
    $region18: #{tpu_custom_call.1} parent=1 // pred_check
      _
    $region19: #{tpu_custom_call.1} parent=1 // pred_check_branch
      %42 = sbr.rel (0) target = $region21
    $region20: #{tpu_custom_call.1} parent=1 // pred_region
      %44 = dma.done [#allocation6], 16384
    $region21: #{tpu_custom_call.1} parent=1 // pred_fallthru
      _
    %v45 = vld [vmem:[#allocation2] sm:$0xff]
    %v46 = vld [vmem:[#allocation2 + $0x8] sm:$0xff]
    %v47 = vld [vmem:[#allocation2 + $0x10] sm:$0xff]
    %v48 = vld [vmem:[#allocation2 + $0x18] sm:$0xff]
    %v49 = vld [vmem:[#allocation2 + $0x20] sm:$0xff]
    %v50 = vld [vmem:[#allocation2 + $0x28] sm:$0xff]
    %v51 = vld [vmem:[#allocation2 + $0x30] sm:$0xff]
    %v52 = vld [vmem:[#allocation2 + $0x38] sm:$0xff]
    %v53 = vld [vmem:[#allocation5] sm:$0xff]
    %v54 = vld [vmem:[#allocation5 + $0x8] sm:$0xff]
    %v55 = vld [vmem:[#allocation5 + $0x10] sm:$0xff]
    %v56 = vld [vmem:[#allocation5 + $0x18] sm:$0xff]
    %v57 = vld [vmem:[#allocation5 + $0x20] sm:$0xff]
    %v58 = vld [vmem:[#allocation5 + $0x28] sm:$0xff]
    %v59 = vld [vmem:[#allocation5 + $0x30] sm:$0xff]
    %v60 = vld [vmem:[#allocation5 + $0x38] sm:$0xff]
    %v61 = vld [vmem:[#allocation5 + $0x40] sm:$0xff]
    %v62 = vld [vmem:[#allocation5 + $0x48] sm:$0xff]
    %v63 = vld [vmem:[#allocation5 + $0x50] sm:$0xff]
    %v64 = vld [vmem:[#allocation5 + $0x58] sm:$0xff]
    %v65 = vld [vmem:[#allocation5 + $0x60] sm:$0xff]
    %v66 = vld [vmem:[#allocation5 + $0x68] sm:$0xff]
    %v67 = vld [vmem:[#allocation5 + $0x70] sm:$0xff]
    %v68 = vld [vmem:[#allocation5 + $0x78] sm:$0xff]
    %v69 = vld [vmem:[#allocation5 + $0x80] sm:$0xff]
    %v70 = vld [vmem:[#allocation5 + $0x88] sm:$0xff]
    %v71 = vld [vmem:[#allocation5 + $0x90] sm:$0xff]
    %v72 = vld [vmem:[#allocation5 + $0x98] sm:$0xff]
    %v73 = vld [vmem:[#allocation5 + $0xa0] sm:$0xff]
    %v74 = vld [vmem:[#allocation5 + $0xa8] sm:$0xff]
    %v75 = vld [vmem:[#allocation5 + $0xb0] sm:$0xff]
    %v76 = vld [vmem:[#allocation5 + $0xb8] sm:$0xff]
    %v77 = vld [vmem:[#allocation5 + $0xc0] sm:$0xff]
    %v78 = vld [vmem:[#allocation5 + $0xc8] sm:$0xff]
    %v79 = vld [vmem:[#allocation5 + $0xd0] sm:$0xff]
    %v80 = vld [vmem:[#allocation5 + $0xd8] sm:$0xff]
    %v81 = vld [vmem:[#allocation5 + $0xe0] sm:$0xff]
    %v82 = vld [vmem:[#allocation5 + $0xe8] sm:$0xff]
    %v83 = vld [vmem:[#allocation5 + $0xf0] sm:$0xff]
    %v84 = vld [vmem:[#allocation5 + $0xf8] sm:$0xff]
    %v85 = vld [vmem:[#allocation5 + $0x100] sm:$0xff]
    %v86 = vld [vmem:[#allocation5 + $0x108] sm:$0xff]
    %v87 = vld [vmem:[#allocation5 + $0x110] sm:$0xff]
    %v88 = vld [vmem:[#allocation5 + $0x118] sm:$0xff]
    %v89 = vld [vmem:[#allocation5 + $0x120] sm:$0xff]
    %v90 = vld [vmem:[#allocation5 + $0x128] sm:$0xff]
    %v91 = vld [vmem:[#allocation5 + $0x130] sm:$0xff]
    %v92 = vld [vmem:[#allocation5 + $0x138] sm:$0xff]
    %v93 = vld [vmem:[#allocation5 + $0x140] sm:$0xff]
    %v94 = vld [vmem:[#allocation5 + $0x148] sm:$0xff]
    %v95 = vld [vmem:[#allocation5 + $0x150] sm:$0xff]
    %v96 = vld [vmem:[#allocation5 + $0x158] sm:$0xff]
    %v97 = vld [vmem:[#allocation5 + $0x160] sm:$0xff]
    %v98 = vld [vmem:[#allocation5 + $0x168] sm:$0xff]
    %v99 = vld [vmem:[#allocation5 + $0x170] sm:$0xff]
    %v100 = vld [vmem:[#allocation5 + $0x178] sm:$0xff]
    %v101 = vld [vmem:[#allocation5 + $0x180] sm:$0xff]
    %v102 = vld [vmem:[#allocation5 + $0x188] sm:$0xff]
    %v103 = vld [vmem:[#allocation5 + $0x190] sm:$0xff]
    %v104 = vld [vmem:[#allocation5 + $0x198] sm:$0xff]
    %v105 = vld [vmem:[#allocation5 + $0x1a0] sm:$0xff]
    %v106 = vld [vmem:[#allocation5 + $0x1a8] sm:$0xff]
    %v107 = vld [vmem:[#allocation5 + $0x1b0] sm:$0xff]
    %v108 = vld [vmem:[#allocation5 + $0x1b8] sm:$0xff]
    %v109 = vld [vmem:[#allocation5 + $0x1c0] sm:$0xff]
    %v110 = vld [vmem:[#allocation5 + $0x1c8] sm:$0xff]
    %v111 = vld [vmem:[#allocation5 + $0x1d0] sm:$0xff]
    %v112 = vld [vmem:[#allocation5 + $0x1d8] sm:$0xff]
    %v113 = vld [vmem:[#allocation5 + $0x1e0] sm:$0xff]
    %v114 = vld [vmem:[#allocation5 + $0x1e8] sm:$0xff]
    %v115 = vld [vmem:[#allocation5 + $0x1f0] sm:$0xff]
    %v116 = vld [vmem:[#allocation5 + $0x1f8] sm:$0xff]
    %v117 = vld [vmem:[#allocation5 + $0x200] sm:$0xff]
    %v118 = vld [vmem:[#allocation5 + $0x208] sm:$0xff]
    %v119 = vld [vmem:[#allocation5 + $0x210] sm:$0xff]
    %v120 = vld [vmem:[#allocation5 + $0x218] sm:$0xff]
    %v121 = vld [vmem:[#allocation5 + $0x220] sm:$0xff]
    %v122 = vld [vmem:[#allocation5 + $0x228] sm:$0xff]
    %v123 = vld [vmem:[#allocation5 + $0x230] sm:$0xff]
    %v124 = vld [vmem:[#allocation5 + $0x238] sm:$0xff]
    %v125 = vld [vmem:[#allocation5 + $0x240] sm:$0xff]
    %v126 = vld [vmem:[#allocation5 + $0x248] sm:$0xff]
    %v127 = vld [vmem:[#allocation5 + $0x250] sm:$0xff]
    %v128 = vld [vmem:[#allocation5 + $0x258] sm:$0xff]
    %v129 = vld [vmem:[#allocation5 + $0x260] sm:$0xff]
    %v130 = vld [vmem:[#allocation5 + $0x268] sm:$0xff]
    %v131 = vld [vmem:[#allocation5 + $0x270] sm:$0xff]
    %v132 = vld [vmem:[#allocation5 + $0x278] sm:$0xff]
    %v133 = vld [vmem:[#allocation5 + $0x280] sm:$0xff]
    %v134 = vld [vmem:[#allocation5 + $0x288] sm:$0xff]
    %v135 = vld [vmem:[#allocation5 + $0x290] sm:$0xff]
    %v136 = vld [vmem:[#allocation5 + $0x298] sm:$0xff]
    %v137 = vld [vmem:[#allocation5 + $0x2a0] sm:$0xff]
    %v138 = vld [vmem:[#allocation5 + $0x2a8] sm:$0xff]
    %v139 = vld [vmem:[#allocation5 + $0x2b0] sm:$0xff]
    %v140 = vld [vmem:[#allocation5 + $0x2b8] sm:$0xff]
    %v141 = vld [vmem:[#allocation5 + $0x2c0] sm:$0xff]
    %v142 = vld [vmem:[#allocation5 + $0x2c8] sm:$0xff]
    %v143 = vld [vmem:[#allocation5 + $0x2d0] sm:$0xff]
    %v144 = vld [vmem:[#allocation5 + $0x2d8] sm:$0xff]
    %v145 = vld [vmem:[#allocation5 + $0x2e0] sm:$0xff]
    %v146 = vld [vmem:[#allocation5 + $0x2e8] sm:$0xff]
    %v147 = vld [vmem:[#allocation5 + $0x2f0] sm:$0xff]
    %v148 = vld [vmem:[#allocation5 + $0x2f8] sm:$0xff]
    %v149 = vld [vmem:[#allocation5 + $0x300] sm:$0xff]
    %v150 = vld [vmem:[#allocation5 + $0x308] sm:$0xff]
    %v151 = vld [vmem:[#allocation5 + $0x310] sm:$0xff]
    %v152 = vld [vmem:[#allocation5 + $0x318] sm:$0xff]
    %v153 = vld [vmem:[#allocation5 + $0x320] sm:$0xff]
    %v154 = vld [vmem:[#allocation5 + $0x328] sm:$0xff]
    %v155 = vld [vmem:[#allocation5 + $0x330] sm:$0xff]
    %v156 = vld [vmem:[#allocation5 + $0x338] sm:$0xff]
    %v157 = vld [vmem:[#allocation5 + $0x340] sm:$0xff]
    %v158 = vld [vmem:[#allocation5 + $0x348] sm:$0xff]
    %v159 = vld [vmem:[#allocation5 + $0x350] sm:$0xff]
    %v160 = vld [vmem:[#allocation5 + $0x358] sm:$0xff]
    %v161 = vld [vmem:[#allocation5 + $0x360] sm:$0xff]
    %v162 = vld [vmem:[#allocation5 + $0x368] sm:$0xff]
    %v163 = vld [vmem:[#allocation5 + $0x370] sm:$0xff]
    %v164 = vld [vmem:[#allocation5 + $0x378] sm:$0xff]
    %v165 = vld [vmem:[#allocation5 + $0x380] sm:$0xff]
    %v166 = vld [vmem:[#allocation5 + $0x388] sm:$0xff]
    %v167 = vld [vmem:[#allocation5 + $0x390] sm:$0xff]
    %v168 = vld [vmem:[#allocation5 + $0x398] sm:$0xff]
    %v169 = vld [vmem:[#allocation5 + $0x3a0] sm:$0xff]
    %v170 = vld [vmem:[#allocation5 + $0x3a8] sm:$0xff]
    %v171 = vld [vmem:[#allocation5 + $0x3b0] sm:$0xff]
    %v172 = vld [vmem:[#allocation5 + $0x3b8] sm:$0xff]
    %v173 = vld [vmem:[#allocation5 + $0x3c0] sm:$0xff]
    %v174 = vld [vmem:[#allocation5 + $0x3c8] sm:$0xff]
    %v175 = vld [vmem:[#allocation5 + $0x3d0] sm:$0xff]
    %v176 = vld [vmem:[#allocation5 + $0x3d8] sm:$0xff]
    %v177 = vld [vmem:[#allocation5 + $0x3e0] sm:$0xff]
    %v178 = vld [vmem:[#allocation5 + $0x3e8] sm:$0xff]
    %v179 = vld [vmem:[#allocation5 + $0x3f0] sm:$0xff]
    %v180 = vld [vmem:[#allocation5 + $0x3f8] sm:$0xff]
    %v181 = vld [vmem:[%s2] sm:$0x1]
    %v183 = vperm.slane %v181, 0
    %185 = vmatpush.msra.mxu0 %v68
    %186 = vmatpush.msra.mxu0 %v67
    %187 = vmatpush.msra.mxu0 %v66
    %188 = vmatpush.msra.mxu0 %v65
    %189 = vmatpush.msra.mxu0 %v64
    %190 = vmatpush.msra.mxu0 %v63
    %191 = vmatpush.msra.mxu0 %v62
    %192 = vmatpush.msra.mxu0 %v61
    %193 = vmatpush.msra.mxu0 %v60
    %194 = vmatpush.msra.mxu0 %v59
    %195 = vmatpush.msra.mxu0 %v58
    %196 = vmatpush.msra.mxu0 %v57
    %197 = vmatpush.msra.mxu0 %v56
    %198 = vmatpush.msra.mxu0 %v55
    %199 = vmatpush.msra.mxu0 %v54
    %200 = vmatpush.msra.mxu0 %v53
    %201 = vmatmul.f32.gmra.mxu0 %v45
    %v202 = vpop.f32.mrf.mxu0
    %v203 = vadd.f32 %v183, %v202
    %204 = vdwg.mxu0
    %205 = vmatpush.msra.mxu0 %v84
    %206 = vmatpush.msra.mxu0 %v83
    %207 = vmatpush.msra.mxu0 %v82
    %208 = vmatpush.msra.mxu0 %v81
    %209 = vmatpush.msra.mxu0 %v80
    %210 = vmatpush.msra.mxu0 %v79
    %211 = vmatpush.msra.mxu0 %v78
    %212 = vmatpush.msra.mxu0 %v77
    %213 = vmatpush.msra.mxu0 %v76
    %214 = vmatpush.msra.mxu0 %v75
    %215 = vmatpush.msra.mxu0 %v74
    %216 = vmatpush.msra.mxu0 %v73
    %217 = vmatpush.msra.mxu0 %v72
    %218 = vmatpush.msra.mxu0 %v71
    %219 = vmatpush.msra.mxu0 %v70
    %220 = vmatpush.msra.mxu0 %v69
    %221 = vmatmul.f32.gmra.mxu0 %v46
    %v222 = vpop.f32.mrf.mxu0
    %v223 = vadd.f32 %v203, %v222
    %224 = vdwg.mxu0
    %225 = vmatpush.msra.mxu0 %v100
    %226 = vmatpush.msra.mxu0 %v99
    %227 = vmatpush.msra.mxu0 %v98
    %228 = vmatpush.msra.mxu0 %v97
    %229 = vmatpush.msra.mxu0 %v96
    %230 = vmatpush.msra.mxu0 %v95
    %231 = vmatpush.msra.mxu0 %v94
    %232 = vmatpush.msra.mxu0 %v93
    %233 = vmatpush.msra.mxu0 %v92
    %234 = vmatpush.msra.mxu0 %v91
    %235 = vmatpush.msra.mxu0 %v90
    %236 = vmatpush.msra.mxu0 %v89
    %237 = vmatpush.msra.mxu0 %v88
    %238 = vmatpush.msra.mxu0 %v87
    %239 = vmatpush.msra.mxu0 %v86
    %240 = vmatpush.msra.mxu0 %v85
    %241 = vmatmul.f32.gmra.mxu0 %v47
    %v242 = vpop.f32.mrf.mxu0
    %v243 = vadd.f32 %v223, %v242
    %244 = vdwg.mxu0
    %245 = vmatpush.msra.mxu0 %v116
    %246 = vmatpush.msra.mxu0 %v115
    %247 = vmatpush.msra.mxu0 %v114
    %248 = vmatpush.msra.mxu0 %v113
    %249 = vmatpush.msra.mxu0 %v112
    %250 = vmatpush.msra.mxu0 %v111
    %251 = vmatpush.msra.mxu0 %v110
    %252 = vmatpush.msra.mxu0 %v109
    %253 = vmatpush.msra.mxu0 %v108
    %254 = vmatpush.msra.mxu0 %v107
    %255 = vmatpush.msra.mxu0 %v106
    %256 = vmatpush.msra.mxu0 %v105
    %257 = vmatpush.msra.mxu0 %v104
    %258 = vmatpush.msra.mxu0 %v103
    %259 = vmatpush.msra.mxu0 %v102
    %260 = vmatpush.msra.mxu0 %v101
    %261 = vmatmul.f32.gmra.mxu0 %v48
    %v262 = vpop.f32.mrf.mxu0
    %v263 = vadd.f32 %v243, %v262
    %264 = vdwg.mxu0
    %265 = vmatpush.msra.mxu0 %v132
    %266 = vmatpush.msra.mxu0 %v131
    %267 = vmatpush.msra.mxu0 %v130
    %268 = vmatpush.msra.mxu0 %v129
    %269 = vmatpush.msra.mxu0 %v128
    %270 = vmatpush.msra.mxu0 %v127
    %271 = vmatpush.msra.mxu0 %v126
    %272 = vmatpush.msra.mxu0 %v125
    %273 = vmatpush.msra.mxu0 %v124
    %274 = vmatpush.msra.mxu0 %v123
    %275 = vmatpush.msra.mxu0 %v122
    %276 = vmatpush.msra.mxu0 %v121
    %277 = vmatpush.msra.mxu0 %v120
    %278 = vmatpush.msra.mxu0 %v119
    %279 = vmatpush.msra.mxu0 %v118
    %280 = vmatpush.msra.mxu0 %v117
    %281 = vmatmul.f32.gmra.mxu0 %v49
    %v282 = vpop.f32.mrf.mxu0
    %v283 = vadd.f32 %v263, %v282
    %284 = vdwg.mxu0
    %285 = vmatpush.msra.mxu0 %v148
    %286 = vmatpush.msra.mxu0 %v147
    %287 = vmatpush.msra.mxu0 %v146
    %288 = vmatpush.msra.mxu0 %v145
    %289 = vmatpush.msra.mxu0 %v144
    %290 = vmatpush.msra.mxu0 %v143
    %291 = vmatpush.msra.mxu0 %v142
    %292 = vmatpush.msra.mxu0 %v141
    %293 = vmatpush.msra.mxu0 %v140
    %294 = vmatpush.msra.mxu0 %v139
    %295 = vmatpush.msra.mxu0 %v138
    %296 = vmatpush.msra.mxu0 %v137
    %297 = vmatpush.msra.mxu0 %v136
    %298 = vmatpush.msra.mxu0 %v135
    %299 = vmatpush.msra.mxu0 %v134
    %300 = vmatpush.msra.mxu0 %v133
    %301 = vmatmul.f32.gmra.mxu0 %v50
    %v302 = vpop.f32.mrf.mxu0
    %v303 = vadd.f32 %v283, %v302
    %304 = vdwg.mxu0
    %305 = vmatpush.msra.mxu0 %v164
    %306 = vmatpush.msra.mxu0 %v163
    %307 = vmatpush.msra.mxu0 %v162
    %308 = vmatpush.msra.mxu0 %v161
    %309 = vmatpush.msra.mxu0 %v160
    %310 = vmatpush.msra.mxu0 %v159
    %311 = vmatpush.msra.mxu0 %v158
    %312 = vmatpush.msra.mxu0 %v157
    %313 = vmatpush.msra.mxu0 %v156
    %314 = vmatpush.msra.mxu0 %v155
    %315 = vmatpush.msra.mxu0 %v154
    %316 = vmatpush.msra.mxu0 %v153
    %317 = vmatpush.msra.mxu0 %v152
    %318 = vmatpush.msra.mxu0 %v151
    %319 = vmatpush.msra.mxu0 %v150
    %320 = vmatpush.msra.mxu0 %v149
    %321 = vmatmul.f32.gmra.mxu0 %v51
    %v322 = vpop.f32.mrf.mxu0
    %v323 = vadd.f32 %v303, %v322
    %324 = vdwg.mxu0
    %325 = vmatpush.msra.mxu0 %v180
    %326 = vmatpush.msra.mxu0 %v179
    %327 = vmatpush.msra.mxu0 %v178
    %328 = vmatpush.msra.mxu0 %v177
    %329 = vmatpush.msra.mxu0 %v176
    %330 = vmatpush.msra.mxu0 %v175
    %331 = vmatpush.msra.mxu0 %v174
    %332 = vmatpush.msra.mxu0 %v173
    %333 = vmatpush.msra.mxu0 %v172
    %334 = vmatpush.msra.mxu0 %v171
    %335 = vmatpush.msra.mxu0 %v170
    %336 = vmatpush.msra.mxu0 %v169
    %337 = vmatpush.msra.mxu0 %v168
    %338 = vmatpush.msra.mxu0 %v167
    %339 = vmatpush.msra.mxu0 %v166
    %340 = vmatpush.msra.mxu0 %v165
    %341 = vmatmul.f32.gmra.mxu0 %v52
    %v342 = vpop.f32.mrf.mxu0
    %v343 = vadd.f32 %v323, %v342
    %344 = vdwg.mxu0
    %345 = vst [vmem:[#allocation7] sm:$0xff] %v343
    // Predicated region
    $region22: #{tpu_custom_call.1} parent=1 // pred_check
      _
    $region23: #{tpu_custom_call.1} parent=1 // pred_check_branch
      %347 = sbr.rel (0) target = $region25
    $region24: #{tpu_custom_call.1} parent=1 // pred_region
      %349 = vsyncadd [#allocation4], 0
      %s351 = sshll.u32 [#allocation7], 4
      %s352 = int_to_ptr.vmem [resolvable:$true] %s351
      %s353 = sshll.u32 %s3, 4
      %s354 = int_to_ptr.hbm [resolvable:$true] %s353
      %356 = dma.vmem_to_hbm [thread:$0]  %s352, 128, %s354, [#allocation4]
    $region25: #{tpu_custom_call.1} parent=1 // pred_fallthru
      _
    // Predicated region
    $region26: #{tpu_custom_call.1} parent=1 // pred_check
      _
    $region27: #{tpu_custom_call.1} parent=1 // pred_check_branch
      %358 = sbr.rel (0) target = $region29
    $region28: #{tpu_custom_call.1} parent=1 // pred_region
      %360 = dma.done [#allocation4], 128
    $region29: #{tpu_custom_call.1} parent=1 // pred_fallthru
      _
    %361 = vsyncpa [#allocation3], 1
    %362 = vsyncpa [#allocation6], 1
    %363 = vsyncpa [#allocation4], 1

// kernel: tpu_custom_call.1
$region0: #{tpu_custom_call.1}
  #allocation0 [shape = 'u32[]', space=smem, size = 0x4, offset = 0x4, fixed_abs, tag = 'smem constant byte address 0x4 - core index']
  #allocation1 [shape = 'u32[72,128]{1,0:T(1,128)}', space=vmem, size = 0x9000, scoped, tag = 'internal scratch']
  %s0 = inlined_call_operand.hbm [shape: f32[8,1024], index: 0, kind: input, shape index: {}]
  %s1 = inlined_call_operand.hbm [shape: f32[1024,128], index: 1, kind: input, shape index: {}]
  %s2 = inlined_call_operand.vmem [shape: f32[1,128], index: 2, kind: input, shape index: {}]
  %s3 = inlined_call_operand.hbm [shape: f32[8,128], index: 3, kind: output, shape index: {}]
  %s4 = sld [smem:[#allocation0]]
  $region30: #{tpu_custom_call.1} parent=0
    _
  %s6 = ssub.s32 1, %s4
  %s7 = scalar_select 0, %s6, %s4
  $region1: #{tpu_custom_call.1} parent=0
    #allocation2 [shape = 'u8[32768]{0}', space=vmem, size = 0x8000, scoped, tag = 'input window, operand 0, single buffered']
    #allocation3 [shape = 's32[1]{0}', space=sflag, size = 0x4, scoped, tag = 'scoped memory for tpu_custom_call.1']
    #allocation4 [shape = 's32[1]{0}', space=sflag, size = 0x4, scoped, tag = 'scoped memory for tpu_custom_call.1']
    #allocation5 [shape = 'u8[524288]{0}', space=vmem, size = 0x80000, scoped, tag = 'input window, operand 1, single buffered']
    #allocation6 [shape = 's32[1]{0}', space=sflag, size = 0x4, scoped, tag = 'scoped memory for tpu_custom_call.1']
    #allocation7 [shape = 'u8[4096]{0}', space=vmem, size = 0x1000, scoped, tag = 'output window, operand 0, single buffered']
    %8 = vsyncpa [#allocation3], 0
    %9 = vsyncpa [#allocation6], 0
    %10 = vsyncpa [#allocation4], 0
    // Predicated region
    $region2: #{tpu_custom_call.1} parent=1 // pred_check
      _
    $region3: #{tpu_custom_call.1} parent=1 // pred_check_branch
      %12 = sbr.rel (0) target = $region5
    $region4: #{tpu_custom_call.1} parent=1 // pred_region
      %14 = vsyncadd [#allocation3], 0
      %s16 = sshll.u32 %s0, 4
      %s17 = int_to_ptr.hbm [resolvable:$true] %s16
      %s18 = sshll.u32 [#allocation2], 4
      %s19 = int_to_ptr.vmem [resolvable:$true] %s18
      %21 = dma.hbm_to_vmem [thread:$0]  %s17, 1024, %s19, [#allocation3]
    $region5: #{tpu_custom_call.1} parent=1 // pred_fallthru
      _
    // Predicated region
    $region6: #{tpu_custom_call.1} parent=1 // pred_check
      _
    $region7: #{tpu_custom_call.1} parent=1 // pred_check_branch
      %23 = sbr.rel (0) target = $region9
    $region8: #{tpu_custom_call.1} parent=1 // pred_region
      %25 = vsyncadd [#allocation6], 0
      %s26 = sshll.u32 %s1, 4
      %s27 = int_to_ptr.hbm [resolvable:$true] %s26
      %s28 = sshll.u32 [#allocation5], 4
      %s29 = int_to_ptr.vmem [resolvable:$true] %s28
      %34 = dma.hbm_to_vmem [thread:$0]  %s27, 16384, %s29, [#allocation6], 128, 128, 8
    $region9: #{tpu_custom_call.1} parent=1 // pred_fallthru
      _
    // Predicated region
    $region10: #{tpu_custom_call.1} parent=1 // pred_check
      _
    $region11: #{tpu_custom_call.1} parent=1 // pred_check_branch
      %36 = sbr.rel (0) target = $region13
    $region12: #{tpu_custom_call.1} parent=1 // pred_region
      _
    $region13: #{tpu_custom_call.1} parent=1 // pred_fallthru
      _
    // Predicated region
    $region14: #{tpu_custom_call.1} parent=1 // pred_check
      _
    $region15: #{tpu_custom_call.1} parent=1 // pred_check_branch
      %38 = sbr.rel (0) target = $region17
    $region16: #{tpu_custom_call.1} parent=1 // pred_region
      %40 = dma.done [#allocation3], 1024
    $region17: #{tpu_custom_call.1} parent=1 // pred_fallthru
      _
    // Predicated region
    $region18: #{tpu_custom_call.1} parent=1 // pred_check
      _
    $region19: #{tpu_custom_call.1} parent=1 // pred_check_branch
      %42 = sbr.rel (0) target = $region21
    $region20: #{tpu_custom_call.1} parent=1 // pred_region
      %44 = dma.done [#allocation6], 16384
    $region21: #{tpu_custom_call.1} parent=1 // pred_fallthru
      _
    %v45 = vld [vmem:[#allocation2] sm:$0xff]
    %v46 = vld [vmem:[#allocation2 + $0x8] sm:$0xff]
    %v47 = vld [vmem:[#allocation2 + $0x10] sm:$0xff]
    %v48 = vld [vmem:[#allocation2 + $0x18] sm:$0xff]
    %v49 = vld [vmem:[#allocation2 + $0x20] sm:$0xff]
    %v50 = vld [vmem:[#allocation2 + $0x28] sm:$0xff]
    %v51 = vld [vmem:[#allocation2 + $0x30] sm:$0xff]
    %v52 = vld [vmem:[#allocation2 + $0x38] sm:$0xff]
    %v53 = vld [vmem:[#allocation5] sm:$0xff]
    %v54 = vld [vmem:[#allocation5 + $0x8] sm:$0xff]
    %v55 = vld [vmem:[#allocation5 + $0x10] sm:$0xff]
    %v56 = vld [vmem:[#allocation5 + $0x18] sm:$0xff]
    %v57 = vld [vmem:[#allocation5 + $0x20] sm:$0xff]
    %v58 = vld [vmem:[#allocation5 + $0x28] sm:$0xff]
    %v59 = vld [vmem:[#allocation5 + $0x30] sm:$0xff]
    %v60 = vld [vmem:[#allocation5 + $0x38] sm:$0xff]
    %v61 = vld [vmem:[#allocation5 + $0x40] sm:$0xff]
    %v62 = vld [vmem:[#allocation5 + $0x48] sm:$0xff]
    %v63 = vld [vmem:[#allocation5 + $0x50] sm:$0xff]
    %v64 = vld [vmem:[#allocation5 + $0x58] sm:$0xff]
    %v65 = vld [vmem:[#allocation5 + $0x60] sm:$0xff]
    %v66 = vld [vmem:[#allocation5 + $0x68] sm:$0xff]
    %v67 = vld [vmem:[#allocation5 + $0x70] sm:$0xff]
    %v68 = vld [vmem:[#allocation5 + $0x78] sm:$0xff]
    %v69 = vld [vmem:[#allocation5 + $0x80] sm:$0xff]
    %v70 = vld [vmem:[#allocation5 + $0x88] sm:$0xff]
    %v71 = vld [vmem:[#allocation5 + $0x90] sm:$0xff]
    %v72 = vld [vmem:[#allocation5 + $0x98] sm:$0xff]
    %v73 = vld [vmem:[#allocation5 + $0xa0] sm:$0xff]
    %v74 = vld [vmem:[#allocation5 + $0xa8] sm:$0xff]
    %v75 = vld [vmem:[#allocation5 + $0xb0] sm:$0xff]
    %v76 = vld [vmem:[#allocation5 + $0xb8] sm:$0xff]
    %v77 = vld [vmem:[#allocation5 + $0xc0] sm:$0xff]
    %v78 = vld [vmem:[#allocation5 + $0xc8] sm:$0xff]
    %v79 = vld [vmem:[#allocation5 + $0xd0] sm:$0xff]
    %v80 = vld [vmem:[#allocation5 + $0xd8] sm:$0xff]
    %v81 = vld [vmem:[#allocation5 + $0xe0] sm:$0xff]
    %v82 = vld [vmem:[#allocation5 + $0xe8] sm:$0xff]
    %v83 = vld [vmem:[#allocation5 + $0xf0] sm:$0xff]
    %v84 = vld [vmem:[#allocation5 + $0xf8] sm:$0xff]
    %v85 = vld [vmem:[#allocation5 + $0x100] sm:$0xff]
    %v86 = vld [vmem:[#allocation5 + $0x108] sm:$0xff]
    %v87 = vld [vmem:[#allocation5 + $0x110] sm:$0xff]
    %v88 = vld [vmem:[#allocation5 + $0x118] sm:$0xff]
    %v89 = vld [vmem:[#allocation5 + $0x120] sm:$0xff]
    %v90 = vld [vmem:[#allocation5 + $0x128] sm:$0xff]
    %v91 = vld [vmem:[#allocation5 + $0x130] sm:$0xff]
    %v92 = vld [vmem:[#allocation5 + $0x138] sm:$0xff]
    %v93 = vld [vmem:[#allocation5 + $0x140] sm:$0xff]
    %v94 = vld [vmem:[#allocation5 + $0x148] sm:$0xff]
    %v95 = vld [vmem:[#allocation5 + $0x150] sm:$0xff]
    %v96 = vld [vmem:[#allocation5 + $0x158] sm:$0xff]
    %v97 = vld [vmem:[#allocation5 + $0x160] sm:$0xff]
    %v98 = vld [vmem:[#allocation5 + $0x168] sm:$0xff]
    %v99 = vld [vmem:[#allocation5 + $0x170] sm:$0xff]
    %v100 = vld [vmem:[#allocation5 + $0x178] sm:$0xff]
    %v101 = vld [vmem:[#allocation5 + $0x180] sm:$0xff]
    %v102 = vld [vmem:[#allocation5 + $0x188] sm:$0xff]
    %v103 = vld [vmem:[#allocation5 + $0x190] sm:$0xff]
    %v104 = vld [vmem:[#allocation5 + $0x198] sm:$0xff]
    %v105 = vld [vmem:[#allocation5 + $0x1a0] sm:$0xff]
    %v106 = vld [vmem:[#allocation5 + $0x1a8] sm:$0xff]
    %v107 = vld [vmem:[#allocation5 + $0x1b0] sm:$0xff]
    %v108 = vld [vmem:[#allocation5 + $0x1b8] sm:$0xff]
    %v109 = vld [vmem:[#allocation5 + $0x1c0] sm:$0xff]
    %v110 = vld [vmem:[#allocation5 + $0x1c8] sm:$0xff]
    %v111 = vld [vmem:[#allocation5 + $0x1d0] sm:$0xff]
    %v112 = vld [vmem:[#allocation5 + $0x1d8] sm:$0xff]
    %v113 = vld [vmem:[#allocation5 + $0x1e0] sm:$0xff]
    %v114 = vld [vmem:[#allocation5 + $0x1e8] sm:$0xff]
    %v115 = vld [vmem:[#allocation5 + $0x1f0] sm:$0xff]
    %v116 = vld [vmem:[#allocation5 + $0x1f8] sm:$0xff]
    %v117 = vld [vmem:[#allocation5 + $0x200] sm:$0xff]
    %v118 = vld [vmem:[#allocation5 + $0x208] sm:$0xff]
    %v119 = vld [vmem:[#allocation5 + $0x210] sm:$0xff]
    %v120 = vld [vmem:[#allocation5 + $0x218] sm:$0xff]
    %v121 = vld [vmem:[#allocation5 + $0x220] sm:$0xff]
    %v122 = vld [vmem:[#allocation5 + $0x228] sm:$0xff]
    %v123 = vld [vmem:[#allocation5 + $0x230] sm:$0xff]
    %v124 = vld [vmem:[#allocation5 + $0x238] sm:$0xff]
    %v125 = vld [vmem:[#allocation5 + $0x240] sm:$0xff]
    %v126 = vld [vmem:[#allocation5 + $0x248] sm:$0xff]
    %v127 = vld [vmem:[#allocation5 + $0x250] sm:$0xff]
    %v128 = vld [vmem:[#allocation5 + $0x258] sm:$0xff]
    %v129 = vld [vmem:[#allocation5 + $0x260] sm:$0xff]
    %v130 = vld [vmem:[#allocation5 + $0x268] sm:$0xff]
    %v131 = vld [vmem:[#allocation5 + $0x270] sm:$0xff]
    %v132 = vld [vmem:[#allocation5 + $0x278] sm:$0xff]
    %v133 = vld [vmem:[#allocation5 + $0x280] sm:$0xff]
    %v134 = vld [vmem:[#allocation5 + $0x288] sm:$0xff]
    %v135 = vld [vmem:[#allocation5 + $0x290] sm:$0xff]
    %v136 = vld [vmem:[#allocation5 + $0x298] sm:$0xff]
    %v137 = vld [vmem:[#allocation5 + $0x2a0] sm:$0xff]
    %v138 = vld [vmem:[#allocation5 + $0x2a8] sm:$0xff]
    %v139 = vld [vmem:[#allocation5 + $0x2b0] sm:$0xff]
    %v140 = vld [vmem:[#allocation5 + $0x2b8] sm:$0xff]
    %v141 = vld [vmem:[#allocation5 + $0x2c0] sm:$0xff]
    %v142 = vld [vmem:[#allocation5 + $0x2c8] sm:$0xff]
    %v143 = vld [vmem:[#allocation5 + $0x2d0] sm:$0xff]
    %v144 = vld [vmem:[#allocation5 + $0x2d8] sm:$0xff]
    %v145 = vld [vmem:[#allocation5 + $0x2e0] sm:$0xff]
    %v146 = vld [vmem:[#allocation5 + $0x2e8] sm:$0xff]
    %v147 = vld [vmem:[#allocation5 + $0x2f0] sm:$0xff]
    %v148 = vld [vmem:[#allocation5 + $0x2f8] sm:$0xff]
    %v149 = vld [vmem:[#allocation5 + $0x300] sm:$0xff]
    %v150 = vld [vmem:[#allocation5 + $0x308] sm:$0xff]
    %v151 = vld [vmem:[#allocation5 + $0x310] sm:$0xff]
    %v152 = vld [vmem:[#allocation5 + $0x318] sm:$0xff]
    %v153 = vld [vmem:[#allocation5 + $0x320] sm:$0xff]
    %v154 = vld [vmem:[#allocation5 + $0x328] sm:$0xff]
    %v155 = vld [vmem:[#allocation5 + $0x330] sm:$0xff]
    %v156 = vld [vmem:[#allocation5 + $0x338] sm:$0xff]
    %v157 = vld [vmem:[#allocation5 + $0x340] sm:$0xff]
    %v158 = vld [vmem:[#allocation5 + $0x348] sm:$0xff]
    %v159 = vld [vmem:[#allocation5 + $0x350] sm:$0xff]
    %v160 = vld [vmem:[#allocation5 + $0x358] sm:$0xff]
    %v161 = vld [vmem:[#allocation5 + $0x360] sm:$0xff]
    %v162 = vld [vmem:[#allocation5 + $0x368] sm:$0xff]
    %v163 = vld [vmem:[#allocation5 + $0x370] sm:$0xff]
    %v164 = vld [vmem:[#allocation5 + $0x378] sm:$0xff]
    %v165 = vld [vmem:[#allocation5 + $0x380] sm:$0xff]
    %v166 = vld [vmem:[#allocation5 + $0x388] sm:$0xff]
    %v167 = vld [vmem:[#allocation5 + $0x390] sm:$0xff]
    %v168 = vld [vmem:[#allocation5 + $0x398] sm:$0xff]
    %v169 = vld [vmem:[#allocation5 + $0x3a0] sm:$0xff]
    %v170 = vld [vmem:[#allocation5 + $0x3a8] sm:$0xff]
    %v171 = vld [vmem:[#allocation5 + $0x3b0] sm:$0xff]
    %v172 = vld [vmem:[#allocation5 + $0x3b8] sm:$0xff]
    %v173 = vld [vmem:[#allocation5 + $0x3c0] sm:$0xff]
    %v174 = vld [vmem:[#allocation5 + $0x3c8] sm:$0xff]
    %v175 = vld [vmem:[#allocation5 + $0x3d0] sm:$0xff]
    %v176 = vld [vmem:[#allocation5 + $0x3d8] sm:$0xff]
    %v177 = vld [vmem:[#allocation5 + $0x3e0] sm:$0xff]
    %v178 = vld [vmem:[#allocation5 + $0x3e8] sm:$0xff]
    %v179 = vld [vmem:[#allocation5 + $0x3f0] sm:$0xff]
    %v180 = vld [vmem:[#allocation5 + $0x3f8] sm:$0xff]
    %v181 = vld [vmem:[%s2] sm:$0x1]
    %v183 = vperm.slane %v181, 0
    %185 = vmatpush.msra.mxu0 %v68
    %186 = vmatpush.msra.mxu0 %v67
    %187 = vmatpush.msra.mxu0 %v66
    %188 = vmatpush.msra.mxu0 %v65
    %189 = vmatpush.msra.mxu0 %v64
    %190 = vmatpush.msra.mxu0 %v63
    %191 = vmatpush.msra.mxu0 %v62
    %192 = vmatpush.msra.mxu0 %v61
    %193 = vmatpush.msra.mxu0 %v60
    %194 = vmatpush.msra.mxu0 %v59
    %195 = vmatpush.msra.mxu0 %v58
    %196 = vmatpush.msra.mxu0 %v57
    %197 = vmatpush.msra.mxu0 %v56
    %198 = vmatpush.msra.mxu0 %v55
    %199 = vmatpush.msra.mxu0 %v54
    %200 = vmatpush.msra.mxu0 %v53
    %201 = vmatmul.f32.gmra.mxu0 %v45
    %v202 = vpop.f32.mrf.mxu0
    %v203 = vadd.f32 %v183, %v202
    %204 = vdwg.mxu0
    %205 = vmatpush.msra.mxu0 %v84
    %206 = vmatpush.msra.mxu0 %v83
    %207 = vmatpush.msra.mxu0 %v82
    %208 = vmatpush.msra.mxu0 %v81
    %209 = vmatpush.msra.mxu0 %v80
    %210 = vmatpush.msra.mxu0 %v79
    %211 = vmatpush.msra.mxu0 %v78
    %212 = vmatpush.msra.mxu0 %v77
    %213 = vmatpush.msra.mxu0 %v76
    %214 = vmatpush.msra.mxu0 %v75
    %215 = vmatpush.msra.mxu0 %v74
    %216 = vmatpush.msra.mxu0 %v73
    %217 = vmatpush.msra.mxu0 %v72
    %218 = vmatpush.msra.mxu0 %v71
    %219 = vmatpush.msra.mxu0 %v70
    %220 = vmatpush.msra.mxu0 %v69
    %221 = vmatmul.f32.gmra.mxu0 %v46
    %v222 = vpop.f32.mrf.mxu0
    %v223 = vadd.f32 %v203, %v222
    %224 = vdwg.mxu0
    %225 = vmatpush.msra.mxu0 %v100
    %226 = vmatpush.msra.mxu0 %v99
    %227 = vmatpush.msra.mxu0 %v98
    %228 = vmatpush.msra.mxu0 %v97
    %229 = vmatpush.msra.mxu0 %v96
    %230 = vmatpush.msra.mxu0 %v95
    %231 = vmatpush.msra.mxu0 %v94
    %232 = vmatpush.msra.mxu0 %v93
    %233 = vmatpush.msra.mxu0 %v92
    %234 = vmatpush.msra.mxu0 %v91
    %235 = vmatpush.msra.mxu0 %v90
    %236 = vmatpush.msra.mxu0 %v89
    %237 = vmatpush.msra.mxu0 %v88
    %238 = vmatpush.msra.mxu0 %v87
    %239 = vmatpush.msra.mxu0 %v86
    %240 = vmatpush.msra.mxu0 %v85
    %241 = vmatmul.f32.gmra.mxu0 %v47
    %v242 = vpop.f32.mrf.mxu0
    %v243 = vadd.f32 %v223, %v242
    %244 = vdwg.mxu0
    %245 = vmatpush.msra.mxu0 %v116
    %246 = vmatpush.msra.mxu0 %v115
    %247 = vmatpush.msra.mxu0 %v114
    %248 = vmatpush.msra.mxu0 %v113
    %249 = vmatpush.msra.mxu0 %v112
    %250 = vmatpush.msra.mxu0 %v111
    %251 = vmatpush.msra.mxu0 %v110
    %252 = vmatpush.msra.mxu0 %v109
    %253 = vmatpush.msra.mxu0 %v108
    %254 = vmatpush.msra.mxu0 %v107
    %255 = vmatpush.msra.mxu0 %v106
    %256 = vmatpush.msra.mxu0 %v105
    %257 = vmatpush.msra.mxu0 %v104
    %258 = vmatpush.msra.mxu0 %v103
    %259 = vmatpush.msra.mxu0 %v102
    %260 = vmatpush.msra.mxu0 %v101
    %261 = vmatmul.f32.gmra.mxu0 %v48
    %v262 = vpop.f32.mrf.mxu0
    %v263 = vadd.f32 %v243, %v262
    %264 = vdwg.mxu0
    %265 = vmatpush.msra.mxu0 %v132
    %266 = vmatpush.msra.mxu0 %v131
    %267 = vmatpush.msra.mxu0 %v130
    %268 = vmatpush.msra.mxu0 %v129
    %269 = vmatpush.msra.mxu0 %v128
    %270 = vmatpush.msra.mxu0 %v127
    %271 = vmatpush.msra.mxu0 %v126
    %272 = vmatpush.msra.mxu0 %v125
    %273 = vmatpush.msra.mxu0 %v124
    %274 = vmatpush.msra.mxu0 %v123
    %275 = vmatpush.msra.mxu0 %v122
    %276 = vmatpush.msra.mxu0 %v121
    %277 = vmatpush.msra.mxu0 %v120
    %278 = vmatpush.msra.mxu0 %v119
    %279 = vmatpush.msra.mxu0 %v118
    %280 = vmatpush.msra.mxu0 %v117
    %281 = vmatmul.f32.gmra.mxu0 %v49
    %v282 = vpop.f32.mrf.mxu0
    %v283 = vadd.f32 %v263, %v282
    %284 = vdwg.mxu0
    %285 = vmatpush.msra.mxu0 %v148
    %286 = vmatpush.msra.mxu0 %v147
    %287 = vmatpush.msra.mxu0 %v146
    %288 = vmatpush.msra.mxu0 %v145
    %289 = vmatpush.msra.mxu0 %v144
    %290 = vmatpush.msra.mxu0 %v143
    %291 = vmatpush.msra.mxu0 %v142
    %292 = vmatpush.msra.mxu0 %v141
    %293 = vmatpush.msra.mxu0 %v140
    %294 = vmatpush.msra.mxu0 %v139
    %295 = vmatpush.msra.mxu0 %v138
    %296 = vmatpush.msra.mxu0 %v137
    %297 = vmatpush.msra.mxu0 %v136
    %298 = vmatpush.msra.mxu0 %v135
    %299 = vmatpush.msra.mxu0 %v134
    %300 = vmatpush.msra.mxu0 %v133
    %301 = vmatmul.f32.gmra.mxu0 %v50
    %v302 = vpop.f32.mrf.mxu0
    %v303 = vadd.f32 %v283, %v302
    %304 = vdwg.mxu0
    %305 = vmatpush.msra.mxu0 %v164
    %306 = vmatpush.msra.mxu0 %v163
    %307 = vmatpush.msra.mxu0 %v162
    %308 = vmatpush.msra.mxu0 %v161
    %309 = vmatpush.msra.mxu0 %v160
    %310 = vmatpush.msra.mxu0 %v159
    %311 = vmatpush.msra.mxu0 %v158
    %312 = vmatpush.msra.mxu0 %v157
    %313 = vmatpush.msra.mxu0 %v156
    %314 = vmatpush.msra.mxu0 %v155
    %315 = vmatpush.msra.mxu0 %v154
    %316 = vmatpush.msra.mxu0 %v153
    %317 = vmatpush.msra.mxu0 %v152
    %318 = vmatpush.msra.mxu0 %v151
    %319 = vmatpush.msra.mxu0 %v150
    %320 = vmatpush.msra.mxu0 %v149
    %321 = vmatmul.f32.gmra.mxu0 %v51
    %v322 = vpop.f32.mrf.mxu0
    %v323 = vadd.f32 %v303, %v322
    %324 = vdwg.mxu0
    %325 = vmatpush.msra.mxu0 %v180
    %326 = vmatpush.msra.mxu0 %v179
    %327 = vmatpush.msra.mxu0 %v178
    %328 = vmatpush.msra.mxu0 %v177
    %329 = vmatpush.msra.mxu0 %v176
    %330 = vmatpush.msra.mxu0 %v175
    %331 = vmatpush.msra.mxu0 %v174
    %332 = vmatpush.msra.mxu0 %v173
    %333 = vmatpush.msra.mxu0 %v172
    %334 = vmatpush.msra.mxu0 %v171
    %335 = vmatpush.msra.mxu0 %v170
    %336 = vmatpush.msra.mxu0 %v169
    %337 = vmatpush.msra.mxu0 %v168
    %338 = vmatpush.msra.mxu0 %v167
    %339 = vmatpush.msra.mxu0 %v166
    %340 = vmatpush.msra.mxu0 %v165
    %341 = vmatmul.f32.gmra.mxu0 %v52
    %v342 = vpop.f32.mrf.mxu0
    %v343 = vadd.f32 %v323, %v342
    %344 = vdwg.mxu0
    %345 = vst [vmem:[#allocation7] sm:$0xff] %v343
    // Predicated region
    $region22: #{tpu_custom_call.1} parent=1 // pred_check
      _
    $region23: #{tpu_custom_call.1} parent=1 // pred_check_branch
      %347 = sbr.rel (0) target = $region25
    $region24: #{tpu_custom_call.1} parent=1 // pred_region
      %349 = vsyncadd [#allocation4], 0
      %s351 = sshll.u32 [#allocation7], 4
      %s352 = int_to_ptr.vmem [resolvable:$true] %s351
      %s353 = sshll.u32 %s3, 4
      %s354 = int_to_ptr.hbm [resolvable:$true] %s353
      %356 = dma.vmem_to_hbm [thread:$0]  %s352, 128, %s354, [#allocation4]
    $region25: #{tpu_custom_call.1} parent=1 // pred_fallthru
      _
    // Predicated region
    $region26: #{tpu_custom_call.1} parent=1 // pred_check
      _
    $region27: #{tpu_custom_call.1} parent=1 // pred_check_branch
      %358 = sbr.rel (0) target = $region29
    $region28: #{tpu_custom_call.1} parent=1 // pred_region
      %360 = dma.done [#allocation4], 128
    $region29: #{tpu_custom_call.1} parent=1 // pred_fallthru
      _
    %361 = vsyncpa [#allocation3], 1
    %362 = vsyncpa [#allocation6], 1
    %363 = vsyncpa [#allocation4], 1

</llo_original>
